<compile_context>
chip_gen: v6e
topology: v6e:2x2x1
jax: 0.10.0
libtpu: 0.0.40
codegen_flags: <defaults>
</compile_context>

<pallas_src>
import jax
import jax.numpy as jnp
from jax.experimental import pallas as pl
from jax.experimental.pallas import tpu as pltpu


def _make_wrapper_kernel(tb, c, c1, hw, use_vpu_conv):
    """Builds the kernel body for fixed (trace-time) shapes."""
    inv_hw = 1.0 / float(hw)

    def kernel(x_ref, w1_ref, b1_ref, w2_ref, b2_ref, o_ref, acc_ref):
        # Grid: (batch tiles [parallel], HW tiles [arbitrary, innermost]).
        k = pl.program_id(1)

        @pl.when(k == 0)
        def _init():
            acc_ref[...] = jnp.zeros_like(acc_ref)

        if use_vpu_conv:
            # Tiny C: the MXU would pad the contraction to 128/256 rows, so
            # do the 1x1 conv as C*C1 unrolled VPU FMAs with SMEM scalar
            # weights.  Elementwise work stays f32 (v5e has no bf16 VALU).
            x = x_ref[...].astype(jnp.float32)            # (TB, C, HWt)
            cols = []
            for o in range(c1):
                h_o = w1_ref[o, 0] * x[:, 0, :]           # (TB, HWt)
                for cc in range(1, c):
                    h_o = h_o + w1_ref[o, cc] * x[:, cc, :]
                h_o = jnp.maximum(h_o + b1_ref[o], 0.0)   # bias + ReLU
                # GAP partial sum: cross-lane reduce (XLU slot, idle here).
                cols.append(jnp.sum(h_o, axis=-1, keepdims=True))   # (TB, 1)
            partial = jnp.concatenate(cols, axis=-1)      # (TB, C1)
        else:
            # Large C: per-batch 2-D MXU matmul reusing a single (C1, C)
            # weight tile (no TB-way broadcast of the weights).
            x = x_ref[...]                                # (TB, C, HWt)
            w1t = w1_ref[...]                             # (C1, C)
            b1c = b1_ref[...]                             # (C1, 1)
            rows = []
            for b in range(tb):
                hb = jnp.dot(w1t, x[b], preferred_element_type=jnp.float32)
                hb = jnp.maximum(hb + b1c, 0.0)           # (C1, HWt)
                rows.append(jnp.sum(hb, axis=-1))         # (C1,)
            partial = jnp.stack(rows, axis=0)             # (TB, C1)

        acc_ref[...] = acc_ref[...] + partial

        @pl.when(k == pl.num_programs(1) - 1)
        def _finalize():
            pooled = acc_ref[...] * inv_hw                # (TB, C1) mean pool
            logits = jnp.dot(pooled, w2_ref[...],
                             preferred_element_type=jnp.float32) + b2_ref[...]
            # Softmax over the (lane) class axis; padded classes carry a
            # -1e30 bias so they contribute exp(...) == 0.  Exact divide.
            m = jnp.max(logits, axis=-1, keepdims=True)
            e = jnp.exp(logits - m)
            o_ref[...] = e / jnp.sum(e, axis=-1, keepdims=True)

    return kernel


def _pick_hw_tile(hw, max_lanes):
    """Largest multiple-of-128 divisor of hw that fits max_lanes (else hw)."""
    if hw <= max_lanes:
        return hw
    if hw % 128 != 0:
        # TODO(synk): pad HW to a multiple of 128 to enable lane tiling here.
        return hw
    best = 128
    t = 128
    while t <= min(hw, max_lanes):
        if hw % t == 0:
            best = t
        t += 128
    return best


def model_wrapper_forward(x_nchw, w1, b1, w2, b2, *, compute_dtype=jnp.float32):
    """x_nchw: (B, C, H, W).  Returns softmax probs (B, NUM_CLASSES) in f32.

    compute_dtype: dtype for the activation DMA / matmul inputs.  Pass
    jnp.bfloat16 on v6e/v7x (mem-bound workload) to halve the x bytes;
    accumulation and elementwise math stay f32 inside the kernel.
    """
    B, C, H, W = x_nchw.shape
    HW = H * W
    C1 = w1.shape[1]
    NC = w2.shape[1]

    # ---- batch tiling (TB) -------------------------------------------------
    if B % 8 == 0:
        TB = 8
    elif B <= 8:
        TB = B                                  # whole batch = one tile
    else:
        # Pad B to a multiple of 8 so we never put a huge ragged batch tile
        # (and its VMEM footprint) into a single grid step.
        b_pad = ((B + 7) // 8) * 8
        x_nchw = jnp.pad(x_nchw, ((0, b_pad - B), (0, 0), (0, 0), (0, 0)))
        TB = 8
    B_eff = x_nchw.shape[0]

    # ---- spatial (lane) tiling --------------------------------------------
    itemsize = jnp.dtype(compute_dtype).itemsize
    # ~8 MiB per x buffer (double-buffered ~16 MiB) -> fits v7x scoped VMEM.
    max_lanes = max(128, (8 * 1024 * 1024) // max(TB * C * itemsize, 1))
    HW_tile = _pick_hw_tile(HW, max_lanes)
    grid = (B_eff // TB, HW // HW_tile)

    # ---- operands (free reshape of NCHW: spatial -> lanes) -----------------
    x_k = x_nchw.reshape(B_eff, C, HW).astype(compute_dtype)

    use_vpu_conv = C <= 32
    if use_vpu_conv:
        # Scalar weight table in SMEM; keep f32 (scalar path).
        w1_arg = jnp.transpose(w1).astype(jnp.float32)          # (C1, C)
        b1_arg = b1.astype(jnp.float32)                         # (C1,)
        w1_spec = pl.BlockSpec(memory_space=pltpu.MemorySpace.SMEM)
        b1_spec = pl.BlockSpec(memory_space=pltpu.MemorySpace.SMEM)
    else:
        w1_arg = jnp.transpose(w1).astype(compute_dtype)        # (C1, C)
        b1_arg = b1.reshape(C1, 1).astype(jnp.float32)          # (C1, 1)
        w1_spec = pl.BlockSpec((C1, C), lambda i, k: (0, 0))
        b1_spec = pl.BlockSpec((C1, 1), lambda i, k: (0, 0))

    # Pad the class axis to a full 128-lane slab: padded columns get zero
    # weight and a -1e30 bias so softmax assigns them ~0 probability.
    NC_pad = ((NC + 127) // 128) * 128
    w2_pad = jnp.zeros((C1, NC_pad), jnp.float32).at[:, :NC].set(
        w2.astype(jnp.float32))
    b2_pad = jnp.full((1, NC_pad), -1e30, jnp.float32).at[0, :NC].set(
        b2.astype(jnp.float32))

    kernel = _make_wrapper_kernel(TB, C, C1, HW, use_vpu_conv)

    cost = pl.CostEstimate(
        flops=2 * B_eff * C * C1 * HW + B_eff * C1 * HW + 2 * B_eff * C1 * NC_pad,
        transcendentals=B_eff * NC_pad,
        bytes_accessed=(x_k.size * itemsize
                        + w1_arg.size * w1_arg.dtype.itemsize
                        + b1_arg.size * 4 + w2_pad.size * 4 + b2_pad.size * 4
                        + B_eff * NC_pad * 4),
    )

    out = pl.pallas_call(
        kernel,
        out_shape=jax.ShapeDtypeStruct((B_eff, NC_pad), jnp.float32),
        grid_spec=pltpu.PrefetchScalarGridSpec(
            num_scalar_prefetch=0,
            grid=grid,
            in_specs=[
                pl.BlockSpec((TB, C, HW_tile), lambda i, k: (i, 0, k)),  # x
                w1_spec,                                                  # conv W
                b1_spec,                                                  # conv b
                pl.BlockSpec((C1, NC_pad), lambda i, k: (0, 0)),          # head W
                pl.BlockSpec((1, NC_pad), lambda i, k: (0, 0)),           # head b
            ],
            out_specs=pl.BlockSpec((TB, NC_pad), lambda i, k: (i, 0)),
            scratch_shapes=[pltpu.VMEM((TB, C1), jnp.float32)],           # GAP acc
        ),
        compiler_params=pltpu.CompilerParams(
            dimension_semantics=("parallel", "arbitrary")),
        cost_estimate=cost,
    )(x_k, w1_arg, b1_arg, w2_pad, b2_pad)

    return out[:B, :NC]


def _reference(x_nchw, w1, b1, w2, b2):
    """Pure-JAX reference mirroring the PyTorch semantics."""
    B, C, H, W = x_nchw.shape
    x = jnp.transpose(x_nchw, (0, 2, 3, 1)).reshape(B, H * W, C)
    h = jnp.maximum(jnp.einsum("bpc,cd->bpd", x, w1) + b1, 0.0)
    pooled = jnp.mean(h, axis=1)
    logits = pooled @ w2 + b2
    return jax.nn.softmax(logits, axis=1)


if __name__ == "__main__":
    B, C, H, W = 2, 4, 16, 16
    C1, NC = 8, 8

    key = jax.random.PRNGKey(0)
    kx, k1, k2, k3, k4 = jax.random.split(key, 5)
    x = jax.random.normal(kx, (B, C, H, W), dtype=jnp.float32)
    w1 = 0.1 * jax.random.normal(k1, (C, C1), dtype=jnp.float32)
    b1 = 0.1 * jax.random.normal(k2, (C1,), dtype=jnp.float32)
    w2 = 0.1 * jax.random.normal(k3, (C1, NC), dtype=jnp.float32)
    b2 = 0.1 * jax.random.normal(k4, (NC,), dtype=jnp.float32)

    out = model_wrapper_forward(x, w1, b1, w2, b2)
    jax.block_until_ready(out)

    ref = _reference(x, w1, b1, w2, b2)
    assert out.shape == (B, NC)
    # Exact divide restored -> tight f32 tolerance again.
    err = float(jnp.max(jnp.abs(out - ref)))
    assert jnp.allclose(out, ref, atol=2e-5, rtol=2e-5), err
    assert jnp.allclose(jnp.sum(out, axis=1), 1.0, atol=1e-5)

    print("KERNEL_OK")
</pallas_src>

<mosaic_0001>
module attributes {stable_mosaic.version = 11 : i64} {
  func.func @kernel(%arg0: i32, %arg1: i32, %arg2: memref<2x4x256xf32, #tpu.memory_space<vmem>>, %arg3: memref<8x4xf32, #tpu.memory_space<smem>>, %arg4: memref<8xf32, #tpu.memory_space<smem>>, %arg5: memref<8x128xf32, #tpu.memory_space<vmem>>, %arg6: memref<1x128xf32, #tpu.memory_space<vmem>>, %arg7: memref<2x128xf32, #tpu.memory_space<vmem>>, %arg8: memref<2x8xf32, #tpu.memory_space<vmem>>) attributes {dimension_semantics = [#tpu.dimension_semantics<parallel>, #tpu.dimension_semantics<arbitrary>], iteration_bounds = array<i64: 1, 1>, scalar_prefetch = 0 : i64, scratch_operands = 1 : i64, tpu.core_type = #tpu.core_type<tc>, window_params = [{transform_indices = @transform_0, window_bounds = array<i64: 2, 4, 256>}, {transform_indices = @transform_1, window_bounds = array<i64: 8, 4>}, {transform_indices = @transform_2, window_bounds = array<i64: 8>}, {pipeline_mode = #tpu.pipeline_mode<synchronous>, transform_indices = @transform_3, window_bounds = array<i64: 8, 128>}, {pipeline_mode = #tpu.pipeline_mode<synchronous>, transform_indices = @transform_4, window_bounds = array<i64: 1, 128>}, {transform_indices = @transform_5, window_bounds = array<i64: 2, 128>}]} {
    %c0_i32 = arith.constant 0 : i32
    %0 = arith.cmpi eq, %arg1, %c0_i32 : i32
    %1 = arith.extui %0 : i1 to i32
    %c0_i32_0 = arith.constant 0 : i32
    %2 = arith.cmpi ne, %1, %c0_i32_0 : i32
    scf.if %2 {
      %cst_89 = arith.constant 0.000000e+00 : f32
      %251 = vector.broadcast %cst_89 : f32 to vector<2x8xf32>
      %c0_90 = arith.constant 0 : index
      %c0_91 = arith.constant 0 : index
      %252 = vector.load %arg8[%c0_90, %c0_91] : memref<2x8xf32, #tpu.memory_space<vmem>>, vector<2x8xf32>
      tpu.vector_store %arg8[%c0_90, %c0_91], %251 {strides = array<i32>} : memref<2x8xf32, #tpu.memory_space<vmem>>, vector<2x8xf32>,
    } else {
    }
    %c0 = arith.constant 0 : index
    %c0_1 = arith.constant 0 : index
    %c0_2 = arith.constant 0 : index
    %3 = vector.load %arg2[%c0, %c0_1, %c0_2] : memref<2x4x256xf32, #tpu.memory_space<vmem>>, vector<2x4x256xf32>
    %c0_3 = arith.constant 0 : index
    %c0_4 = arith.constant 0 : index
    %4 = memref.load %arg3[%c0_3, %c0_4] : memref<8x4xf32, #tpu.memory_space<smem>>
    %5 = vector.extract_strided_slice %3 {offsets = [0, 0, 0], sizes = [2, 1, 256], strides = [1, 1, 1]} : vector<2x4x256xf32> to vector<2x1x256xf32>
    %6 = vector.shape_cast %5 : vector<2x1x256xf32> to vector<2x256xf32>
    %7 = vector.broadcast %4 : f32 to vector<2x256xf32>
    %8 = arith.mulf %7, %6 : vector<2x256xf32>
    %c0_5 = arith.constant 0 : index
    %c1 = arith.constant 1 : index
    %9 = memref.load %arg3[%c0_5, %c1] : memref<8x4xf32, #tpu.memory_space<smem>>
    %10 = vector.extract_strided_slice %3 {offsets = [0, 1, 0], sizes = [2, 1, 256], strides = [1, 1, 1]} : vector<2x4x256xf32> to vector<2x1x256xf32>
    %11 = vector.shape_cast %10 : vector<2x1x256xf32> to vector<2x256xf32>
    %12 = vector.broadcast %9 : f32 to vector<2x256xf32>
    %13 = arith.mulf %12, %11 : vector<2x256xf32>
    %14 = arith.addf %8, %13 : vector<2x256xf32>
    %c0_6 = arith.constant 0 : index
    %c2 = arith.constant 2 : index
    %15 = memref.load %arg3[%c0_6, %c2] : memref<8x4xf32, #tpu.memory_space<smem>>
    %16 = vector.extract_strided_slice %3 {offsets = [0, 2, 0], sizes = [2, 1, 256], strides = [1, 1, 1]} : vector<2x4x256xf32> to vector<2x1x256xf32>
    %17 = vector.shape_cast %16 : vector<2x1x256xf32> to vector<2x256xf32>
    %18 = vector.broadcast %15 : f32 to vector<2x256xf32>
    %19 = arith.mulf %18, %17 : vector<2x256xf32>
    %20 = arith.addf %14, %19 : vector<2x256xf32>
    %c0_7 = arith.constant 0 : index
    %c3 = arith.constant 3 : index
    %21 = memref.load %arg3[%c0_7, %c3] : memref<8x4xf32, #tpu.memory_space<smem>>
    %22 = vector.extract_strided_slice %3 {offsets = [0, 3, 0], sizes = [2, 1, 256], strides = [1, 1, 1]} : vector<2x4x256xf32> to vector<2x1x256xf32>
    %23 = vector.shape_cast %22 : vector<2x1x256xf32> to vector<2x256xf32>
    %24 = vector.broadcast %21 : f32 to vector<2x256xf32>
    %25 = arith.mulf %24, %23 : vector<2x256xf32>
    %26 = arith.addf %20, %25 : vector<2x256xf32>
    %c0_8 = arith.constant 0 : index
    %27 = memref.load %arg4[%c0_8] : memref<8xf32, #tpu.memory_space<smem>>
    %28 = vector.broadcast %27 : f32 to vector<2x256xf32>
    %29 = arith.addf %26, %28 : vector<2x256xf32>
    %cst = arith.constant 0.000000e+00 : f32
    %30 = vector.broadcast %cst : f32 to vector<2x256xf32>
    %31 = arith.maximumf %29, %30 : vector<2x256xf32>
    %cst_9 = arith.constant dense<0.000000e+00> : vector<2xf32>
    %32 = vector.multi_reduction <add>, %31, %cst_9 [1] : vector<2x256xf32> to vector<2xf32>
    %33 = vector.shape_cast %32 : vector<2xf32> to vector<2x1xf32>
    %c1_10 = arith.constant 1 : index
    %c0_11 = arith.constant 0 : index
    %34 = memref.load %arg3[%c1_10, %c0_11] : memref<8x4xf32, #tpu.memory_space<smem>>
    %35 = vector.extract_strided_slice %3 {offsets = [0, 0, 0], sizes = [2, 1, 256], strides = [1, 1, 1]} : vector<2x4x256xf32> to vector<2x1x256xf32>
    %36 = vector.shape_cast %35 : vector<2x1x256xf32> to vector<2x256xf32>
    %37 = vector.broadcast %34 : f32 to vector<2x256xf32>
    %38 = arith.mulf %37, %36 : vector<2x256xf32>
    %c1_12 = arith.constant 1 : index
    %c1_13 = arith.constant 1 : index
    %39 = memref.load %arg3[%c1_12, %c1_13] : memref<8x4xf32, #tpu.memory_space<smem>>
    %40 = vector.extract_strided_slice %3 {offsets = [0, 1, 0], sizes = [2, 1, 256], strides = [1, 1, 1]} : vector<2x4x256xf32> to vector<2x1x256xf32>
    %41 = vector.shape_cast %40 : vector<2x1x256xf32> to vector<2x256xf32>
    %42 = vector.broadcast %39 : f32 to vector<2x256xf32>
    %43 = arith.mulf %42, %41 : vector<2x256xf32>
    %44 = arith.addf %38, %43 : vector<2x256xf32>
    %c1_14 = arith.constant 1 : index
    %c2_15 = arith.constant 2 : index
    %45 = memref.load %arg3[%c1_14, %c2_15] : memref<8x4xf32, #tpu.memory_space<smem>>
    %46 = vector.extract_strided_slice %3 {offsets = [0, 2, 0], sizes = [2, 1, 256], strides = [1, 1, 1]} : vector<2x4x256xf32> to vector<2x1x256xf32>
    %47 = vector.shape_cast %46 : vector<2x1x256xf32> to vector<2x256xf32>
    %48 = vector.broadcast %45 : f32 to vector<2x256xf32>
    %49 = arith.mulf %48, %47 : vector<2x256xf32>
    %50 = arith.addf %44, %49 : vector<2x256xf32>
    %c1_16 = arith.constant 1 : index
    %c3_17 = arith.constant 3 : index
    %51 = memref.load %arg3[%c1_16, %c3_17] : memref<8x4xf32, #tpu.memory_space<smem>>
    %52 = vector.extract_strided_slice %3 {offsets = [0, 3, 0], sizes = [2, 1, 256], strides = [1, 1, 1]} : vector<2x4x256xf32> to vector<2x1x256xf32>
    %53 = vector.shape_cast %52 : vector<2x1x256xf32> to vector<2x256xf32>
    %54 = vector.broadcast %51 : f32 to vector<2x256xf32>
    %55 = arith.mulf %54, %53 : vector<2x256xf32>
    %56 = arith.addf %50, %55 : vector<2x256xf32>
    %c1_18 = arith.constant 1 : index
    %57 = memref.load %arg4[%c1_18] : memref<8xf32, #tpu.memory_space<smem>>
    %58 = vector.broadcast %57 : f32 to vector<2x256xf32>
    %59 = arith.addf %56, %58 : vector<2x256xf32>
    %cst_19 = arith.constant 0.000000e+00 : f32
    %60 = vector.broadcast %cst_19 : f32 to vector<2x256xf32>
    %61 = arith.maximumf %59, %60 : vector<2x256xf32>
    %cst_20 = arith.constant dense<0.000000e+00> : vector<2xf32>
    %62 = vector.multi_reduction <add>, %61, %cst_20 [1] : vector<2x256xf32> to vector<2xf32>
    %63 = vector.shape_cast %62 : vector<2xf32> to vector<2x1xf32>
    %c2_21 = arith.constant 2 : index
    %c0_22 = arith.constant 0 : index
    %64 = memref.load %arg3[%c2_21, %c0_22] : memref<8x4xf32, #tpu.memory_space<smem>>
    %65 = vector.extract_strided_slice %3 {offsets = [0, 0, 0], sizes = [2, 1, 256], strides = [1, 1, 1]} : vector<2x4x256xf32> to vector<2x1x256xf32>
    %66 = vector.shape_cast %65 : vector<2x1x256xf32> to vector<2x256xf32>
    %67 = vector.broadcast %64 : f32 to vector<2x256xf32>
    %68 = arith.mulf %67, %66 : vector<2x256xf32>
    %c2_23 = arith.constant 2 : index
    %c1_24 = arith.constant 1 : index
    %69 = memref.load %arg3[%c2_23, %c1_24] : memref<8x4xf32, #tpu.memory_space<smem>>
    %70 = vector.extract_strided_slice %3 {offsets = [0, 1, 0], sizes = [2, 1, 256], strides = [1, 1, 1]} : vector<2x4x256xf32> to vector<2x1x256xf32>
    %71 = vector.shape_cast %70 : vector<2x1x256xf32> to vector<2x256xf32>
    %72 = vector.broadcast %69 : f32 to vector<2x256xf32>
    %73 = arith.mulf %72, %71 : vector<2x256xf32>
    %74 = arith.addf %68, %73 : vector<2x256xf32>
    %c2_25 = arith.constant 2 : index
    %c2_26 = arith.constant 2 : index
    %75 = memref.load %arg3[%c2_25, %c2_26] : memref<8x4xf32, #tpu.memory_space<smem>>
    %76 = vector.extract_strided_slice %3 {offsets = [0, 2, 0], sizes = [2, 1, 256], strides = [1, 1, 1]} : vector<2x4x256xf32> to vector<2x1x256xf32>
    %77 = vector.shape_cast %76 : vector<2x1x256xf32> to vector<2x256xf32>
    %78 = vector.broadcast %75 : f32 to vector<2x256xf32>
    %79 = arith.mulf %78, %77 : vector<2x256xf32>
    %80 = arith.addf %74, %79 : vector<2x256xf32>
    %c2_27 = arith.constant 2 : index
    %c3_28 = arith.constant 3 : index
    %81 = memref.load %arg3[%c2_27, %c3_28] : memref<8x4xf32, #tpu.memory_space<smem>>
    %82 = vector.extract_strided_slice %3 {offsets = [0, 3, 0], sizes = [2, 1, 256], strides = [1, 1, 1]} : vector<2x4x256xf32> to vector<2x1x256xf32>
    %83 = vector.shape_cast %82 : vector<2x1x256xf32> to vector<2x256xf32>
    %84 = vector.broadcast %81 : f32 to vector<2x256xf32>
    %85 = arith.mulf %84, %83 : vector<2x256xf32>
    %86 = arith.addf %80, %85 : vector<2x256xf32>
    %c2_29 = arith.constant 2 : index
    %87 = memref.load %arg4[%c2_29] : memref<8xf32, #tpu.memory_space<smem>>
    %88 = vector.broadcast %87 : f32 to vector<2x256xf32>
    %89 = arith.addf %86, %88 : vector<2x256xf32>
    %cst_30 = arith.constant 0.000000e+00 : f32
    %90 = vector.broadcast %cst_30 : f32 to vector<2x256xf32>
    %91 = arith.maximumf %89, %90 : vector<2x256xf32>
    %cst_31 = arith.constant dense<0.000000e+00> : vector<2xf32>
    %92 = vector.multi_reduction <add>, %91, %cst_31 [1] : vector<2x256xf32> to vector<2xf32>
    %93 = vector.shape_cast %92 : vector<2xf32> to vector<2x1xf32>
    %c3_32 = arith.constant 3 : index
    %c0_33 = arith.constant 0 : index
    %94 = memref.load %arg3[%c3_32, %c0_33] : memref<8x4xf32, #tpu.memory_space<smem>>
    %95 = vector.extract_strided_slice %3 {offsets = [0, 0, 0], sizes = [2, 1, 256], strides = [1, 1, 1]} : vector<2x4x256xf32> to vector<2x1x256xf32>
    %96 = vector.shape_cast %95 : vector<2x1x256xf32> to vector<2x256xf32>
    %97 = vector.broadcast %94 : f32 to vector<2x256xf32>
    %98 = arith.mulf %97, %96 : vector<2x256xf32>
    %c3_34 = arith.constant 3 : index
    %c1_35 = arith.constant 1 : index
    %99 = memref.load %arg3[%c3_34, %c1_35] : memref<8x4xf32, #tpu.memory_space<smem>>
    %100 = vector.extract_strided_slice %3 {offsets = [0, 1, 0], sizes = [2, 1, 256], strides = [1, 1, 1]} : vector<2x4x256xf32> to vector<2x1x256xf32>
    %101 = vector.shape_cast %100 : vector<2x1x256xf32> to vector<2x256xf32>
    %102 = vector.broadcast %99 : f32 to vector<2x256xf32>
    %103 = arith.mulf %102, %101 : vector<2x256xf32>
    %104 = arith.addf %98, %103 : vector<2x256xf32>
    %c3_36 = arith.constant 3 : index
    %c2_37 = arith.constant 2 : index
    %105 = memref.load %arg3[%c3_36, %c2_37] : memref<8x4xf32, #tpu.memory_space<smem>>
    %106 = vector.extract_strided_slice %3 {offsets = [0, 2, 0], sizes = [2, 1, 256], strides = [1, 1, 1]} : vector<2x4x256xf32> to vector<2x1x256xf32>
    %107 = vector.shape_cast %106 : vector<2x1x256xf32> to vector<2x256xf32>
    %108 = vector.broadcast %105 : f32 to vector<2x256xf32>
    %109 = arith.mulf %108, %107 : vector<2x256xf32>
    %110 = arith.addf %104, %109 : vector<2x256xf32>
    %c3_38 = arith.constant 3 : index
    %c3_39 = arith.constant 3 : index
    %111 = memref.load %arg3[%c3_38, %c3_39] : memref<8x4xf32, #tpu.memory_space<smem>>
    %112 = vector.extract_strided_slice %3 {offsets = [0, 3, 0], sizes = [2, 1, 256], strides = [1, 1, 1]} : vector<2x4x256xf32> to vector<2x1x256xf32>
    %113 = vector.shape_cast %112 : vector<2x1x256xf32> to vector<2x256xf32>
    %114 = vector.broadcast %111 : f32 to vector<2x256xf32>
    %115 = arith.mulf %114, %113 : vector<2x256xf32>
    %116 = arith.addf %110, %115 : vector<2x256xf32>
    %c3_40 = arith.constant 3 : index
    %117 = memref.load %arg4[%c3_40] : memref<8xf32, #tpu.memory_space<smem>>
    %118 = vector.broadcast %117 : f32 to vector<2x256xf32>
    %119 = arith.addf %116, %118 : vector<2x256xf32>
    %cst_41 = arith.constant 0.000000e+00 : f32
    %120 = vector.broadcast %cst_41 : f32 to vector<2x256xf32>
    %121 = arith.maximumf %119, %120 : vector<2x256xf32>
    %cst_42 = arith.constant dense<0.000000e+00> : vector<2xf32>
    %122 = vector.multi_reduction <add>, %121, %cst_42 [1] : vector<2x256xf32> to vector<2xf32>
    %123 = vector.shape_cast %122 : vector<2xf32> to vector<2x1xf32>
    %c4 = arith.constant 4 : index
    %c0_43 = arith.constant 0 : index
    %124 = memref.load %arg3[%c4, %c0_43] : memref<8x4xf32, #tpu.memory_space<smem>>
    %125 = vector.extract_strided_slice %3 {offsets = [0, 0, 0], sizes = [2, 1, 256], strides = [1, 1, 1]} : vector<2x4x256xf32> to vector<2x1x256xf32>
    %126 = vector.shape_cast %125 : vector<2x1x256xf32> to vector<2x256xf32>
    %127 = vector.broadcast %124 : f32 to vector<2x256xf32>
    %128 = arith.mulf %127, %126 : vector<2x256xf32>
    %c4_44 = arith.constant 4 : index
    %c1_45 = arith.constant 1 : index
    %129 = memref.load %arg3[%c4_44, %c1_45] : memref<8x4xf32, #tpu.memory_space<smem>>
    %130 = vector.extract_strided_slice %3 {offsets = [0, 1, 0], sizes = [2, 1, 256], strides = [1, 1, 1]} : vector<2x4x256xf32> to vector<2x1x256xf32>
    %131 = vector.shape_cast %130 : vector<2x1x256xf32> to vector<2x256xf32>
    %132 = vector.broadcast %129 : f32 to vector<2x256xf32>
    %133 = arith.mulf %132, %131 : vector<2x256xf32>
    %134 = arith.addf %128, %133 : vector<2x256xf32>
    %c4_46 = arith.constant 4 : index
    %c2_47 = arith.constant 2 : index
    %135 = memref.load %arg3[%c4_46, %c2_47] : memref<8x4xf32, #tpu.memory_space<smem>>
    %136 = vector.extract_strided_slice %3 {offsets = [0, 2, 0], sizes = [2, 1, 256], strides = [1, 1, 1]} : vector<2x4x256xf32> to vector<2x1x256xf32>
    %137 = vector.shape_cast %136 : vector<2x1x256xf32> to vector<2x256xf32>
    %138 = vector.broadcast %135 : f32 to vector<2x256xf32>
    %139 = arith.mulf %138, %137 : vector<2x256xf32>
    %140 = arith.addf %134, %139 : vector<2x256xf32>
    %c4_48 = arith.constant 4 : index
    %c3_49 = arith.constant 3 : index
    %141 = memref.load %arg3[%c4_48, %c3_49] : memref<8x4xf32, #tpu.memory_space<smem>>
    %142 = vector.extract_strided_slice %3 {offsets = [0, 3, 0], sizes = [2, 1, 256], strides = [1, 1, 1]} : vector<2x4x256xf32> to vector<2x1x256xf32>
    %143 = vector.shape_cast %142 : vector<2x1x256xf32> to vector<2x256xf32>
    %144 = vector.broadcast %141 : f32 to vector<2x256xf32>
    %145 = arith.mulf %144, %143 : vector<2x256xf32>
    %146 = arith.addf %140, %145 : vector<2x256xf32>
    %c4_50 = arith.constant 4 : index
    %147 = memref.load %arg4[%c4_50] : memref<8xf32, #tpu.memory_space<smem>>
    %148 = vector.broadcast %147 : f32 to vector<2x256xf32>
    %149 = arith.addf %146, %148 : vector<2x256xf32>
    %cst_51 = arith.constant 0.000000e+00 : f32
    %150 = vector.broadcast %cst_51 : f32 to vector<2x256xf32>
    %151 = arith.maximumf %149, %150 : vector<2x256xf32>
    %cst_52 = arith.constant dense<0.000000e+00> : vector<2xf32>
    %152 = vector.multi_reduction <add>, %151, %cst_52 [1] : vector<2x256xf32> to vector<2xf32>
    %153 = vector.shape_cast %152 : vector<2xf32> to vector<2x1xf32>
    %c5 = arith.constant 5 : index
    %c0_53 = arith.constant 0 : index
    %154 = memref.load %arg3[%c5, %c0_53] : memref<8x4xf32, #tpu.memory_space<smem>>
    %155 = vector.extract_strided_slice %3 {offsets = [0, 0, 0], sizes = [2, 1, 256], strides = [1, 1, 1]} : vector<2x4x256xf32> to vector<2x1x256xf32>
    %156 = vector.shape_cast %155 : vector<2x1x256xf32> to vector<2x256xf32>
    %157 = vector.broadcast %154 : f32 to vector<2x256xf32>
    %158 = arith.mulf %157, %156 : vector<2x256xf32>
    %c5_54 = arith.constant 5 : index
    %c1_55 = arith.constant 1 : index
    %159 = memref.load %arg3[%c5_54, %c1_55] : memref<8x4xf32, #tpu.memory_space<smem>>
    %160 = vector.extract_strided_slice %3 {offsets = [0, 1, 0], sizes = [2, 1, 256], strides = [1, 1, 1]} : vector<2x4x256xf32> to vector<2x1x256xf32>
    %161 = vector.shape_cast %160 : vector<2x1x256xf32> to vector<2x256xf32>
    %162 = vector.broadcast %159 : f32 to vector<2x256xf32>
    %163 = arith.mulf %162, %161 : vector<2x256xf32>
    %164 = arith.addf %158, %163 : vector<2x256xf32>
    %c5_56 = arith.constant 5 : index
    %c2_57 = arith.constant 2 : index
    %165 = memref.load %arg3[%c5_56, %c2_57] : memref<8x4xf32, #tpu.memory_space<smem>>
    %166 = vector.extract_strided_slice %3 {offsets = [0, 2, 0], sizes = [2, 1, 256], strides = [1, 1, 1]} : vector<2x4x256xf32> to vector<2x1x256xf32>
    %167 = vector.shape_cast %166 : vector<2x1x256xf32> to vector<2x256xf32>
    %168 = vector.broadcast %165 : f32 to vector<2x256xf32>
    %169 = arith.mulf %168, %167 : vector<2x256xf32>
    %170 = arith.addf %164, %169 : vector<2x256xf32>
    %c5_58 = arith.constant 5 : index
    %c3_59 = arith.constant 3 : index
    %171 = memref.load %arg3[%c5_58, %c3_59] : memref<8x4xf32, #tpu.memory_space<smem>>
    %172 = vector.extract_strided_slice %3 {offsets = [0, 3, 0], sizes = [2, 1, 256], strides = [1, 1, 1]} : vector<2x4x256xf32> to vector<2x1x256xf32>
    %173 = vector.shape_cast %172 : vector<2x1x256xf32> to vector<2x256xf32>
    %174 = vector.broadcast %171 : f32 to vector<2x256xf32>
    %175 = arith.mulf %174, %173 : vector<2x256xf32>
    %176 = arith.addf %170, %175 : vector<2x256xf32>
    %c5_60 = arith.constant 5 : index
    %177 = memref.load %arg4[%c5_60] : memref<8xf32, #tpu.memory_space<smem>>
    %178 = vector.broadcast %177 : f32 to vector<2x256xf32>
    %179 = arith.addf %176, %178 : vector<2x256xf32>
    %cst_61 = arith.constant 0.000000e+00 : f32
    %180 = vector.broadcast %cst_61 : f32 to vector<2x256xf32>
    %181 = arith.maximumf %179, %180 : vector<2x256xf32>
    %cst_62 = arith.constant dense<0.000000e+00> : vector<2xf32>
    %182 = vector.multi_reduction <add>, %181, %cst_62 [1] : vector<2x256xf32> to vector<2xf32>
    %183 = vector.shape_cast %182 : vector<2xf32> to vector<2x1xf32>
    %c6 = arith.constant 6 : index
    %c0_63 = arith.constant 0 : index
    %184 = memref.load %arg3[%c6, %c0_63] : memref<8x4xf32, #tpu.memory_space<smem>>
    %185 = vector.extract_strided_slice %3 {offsets = [0, 0, 0], sizes = [2, 1, 256], strides = [1, 1, 1]} : vector<2x4x256xf32> to vector<2x1x256xf32>
    %186 = vector.shape_cast %185 : vector<2x1x256xf32> to vector<2x256xf32>
    %187 = vector.broadcast %184 : f32 to vector<2x256xf32>
    %188 = arith.mulf %187, %186 : vector<2x256xf32>
    %c6_64 = arith.constant 6 : index
    %c1_65 = arith.constant 1 : index
    %189 = memref.load %arg3[%c6_64, %c1_65] : memref<8x4xf32, #tpu.memory_space<smem>>
    %190 = vector.extract_strided_slice %3 {offsets = [0, 1, 0], sizes = [2, 1, 256], strides = [1, 1, 1]} : vector<2x4x256xf32> to vector<2x1x256xf32>
    %191 = vector.shape_cast %190 : vector<2x1x256xf32> to vector<2x256xf32>
    %192 = vector.broadcast %189 : f32 to vector<2x256xf32>
    %193 = arith.mulf %192, %191 : vector<2x256xf32>
    %194 = arith.addf %188, %193 : vector<2x256xf32>
    %c6_66 = arith.constant 6 : index
    %c2_67 = arith.constant 2 : index
    %195 = memref.load %arg3[%c6_66, %c2_67] : memref<8x4xf32, #tpu.memory_space<smem>>
    %196 = vector.extract_strided_slice %3 {offsets = [0, 2, 0], sizes = [2, 1, 256], strides = [1, 1, 1]} : vector<2x4x256xf32> to vector<2x1x256xf32>
    %197 = vector.shape_cast %196 : vector<2x1x256xf32> to vector<2x256xf32>
    %198 = vector.broadcast %195 : f32 to vector<2x256xf32>
    %199 = arith.mulf %198, %197 : vector<2x256xf32>
    %200 = arith.addf %194, %199 : vector<2x256xf32>
    %c6_68 = arith.constant 6 : index
    %c3_69 = arith.constant 3 : index
    %201 = memref.load %arg3[%c6_68, %c3_69] : memref<8x4xf32, #tpu.memory_space<smem>>
    %202 = vector.extract_strided_slice %3 {offsets = [0, 3, 0], sizes = [2, 1, 256], strides = [1, 1, 1]} : vector<2x4x256xf32> to vector<2x1x256xf32>
    %203 = vector.shape_cast %202 : vector<2x1x256xf32> to vector<2x256xf32>
    %204 = vector.broadcast %201 : f32 to vector<2x256xf32>
    %205 = arith.mulf %204, %203 : vector<2x256xf32>
    %206 = arith.addf %200, %205 : vector<2x256xf32>
    %c6_70 = arith.constant 6 : index
    %207 = memref.load %arg4[%c6_70] : memref<8xf32, #tpu.memory_space<smem>>
    %208 = vector.broadcast %207 : f32 to vector<2x256xf32>
    %209 = arith.addf %206, %208 : vector<2x256xf32>
    %cst_71 = arith.constant 0.000000e+00 : f32
    %210 = vector.broadcast %cst_71 : f32 to vector<2x256xf32>
    %211 = arith.maximumf %209, %210 : vector<2x256xf32>
    %cst_72 = arith.constant dense<0.000000e+00> : vector<2xf32>
    %212 = vector.multi_reduction <add>, %211, %cst_72 [1] : vector<2x256xf32> to vector<2xf32>
    %213 = vector.shape_cast %212 : vector<2xf32> to vector<2x1xf32>
    %c7 = arith.constant 7 : index
    %c0_73 = arith.constant 0 : index
    %214 = memref.load %arg3[%c7, %c0_73] : memref<8x4xf32, #tpu.memory_space<smem>>
    %215 = vector.extract_strided_slice %3 {offsets = [0, 0, 0], sizes = [2, 1, 256], strides = [1, 1, 1]} : vector<2x4x256xf32> to vector<2x1x256xf32>
    %216 = vector.shape_cast %215 : vector<2x1x256xf32> to vector<2x256xf32>
    %217 = vector.broadcast %214 : f32 to vector<2x256xf32>
    %218 = arith.mulf %217, %216 : vector<2x256xf32>
    %c7_74 = arith.constant 7 : index
    %c1_75 = arith.constant 1 : index
    %219 = memref.load %arg3[%c7_74, %c1_75] : memref<8x4xf32, #tpu.memory_space<smem>>
    %220 = vector.extract_strided_slice %3 {offsets = [0, 1, 0], sizes = [2, 1, 256], strides = [1, 1, 1]} : vector<2x4x256xf32> to vector<2x1x256xf32>
    %221 = vector.shape_cast %220 : vector<2x1x256xf32> to vector<2x256xf32>
    %222 = vector.broadcast %219 : f32 to vector<2x256xf32>
    %223 = arith.mulf %222, %221 : vector<2x256xf32>
    %224 = arith.addf %218, %223 : vector<2x256xf32>
    %c7_76 = arith.constant 7 : index
    %c2_77 = arith.constant 2 : index
    %225 = memref.load %arg3[%c7_76, %c2_77] : memref<8x4xf32, #tpu.memory_space<smem>>
    %226 = vector.extract_strided_slice %3 {offsets = [0, 2, 0], sizes = [2, 1, 256], strides = [1, 1, 1]} : vector<2x4x256xf32> to vector<2x1x256xf32>
    %227 = vector.shape_cast %226 : vector<2x1x256xf32> to vector<2x256xf32>
    %228 = vector.broadcast %225 : f32 to vector<2x256xf32>
    %229 = arith.mulf %228, %227 : vector<2x256xf32>
    %230 = arith.addf %224, %229 : vector<2x256xf32>
    %c7_78 = arith.constant 7 : index
    %c3_79 = arith.constant 3 : index
    %231 = memref.load %arg3[%c7_78, %c3_79] : memref<8x4xf32, #tpu.memory_space<smem>>
    %232 = vector.extract_strided_slice %3 {offsets = [0, 3, 0], sizes = [2, 1, 256], strides = [1, 1, 1]} : vector<2x4x256xf32> to vector<2x1x256xf32>
    %233 = vector.shape_cast %232 : vector<2x1x256xf32> to vector<2x256xf32>
    %234 = vector.broadcast %231 : f32 to vector<2x256xf32>
    %235 = arith.mulf %234, %233 : vector<2x256xf32>
    %236 = arith.addf %230, %235 : vector<2x256xf32>
    %c7_80 = arith.constant 7 : index
    %237 = memref.load %arg4[%c7_80] : memref<8xf32, #tpu.memory_space<smem>>
    %238 = vector.broadcast %237 : f32 to vector<2x256xf32>
    %239 = arith.addf %236, %238 : vector<2x256xf32>
    %cst_81 = arith.constant 0.000000e+00 : f32
    %240 = vector.broadcast %cst_81 : f32 to vector<2x256xf32>
    %241 = arith.maximumf %239, %240 : vector<2x256xf32>
    %cst_82 = arith.constant dense<0.000000e+00> : vector<2xf32>
    %242 = vector.multi_reduction <add>, %241, %cst_82 [1] : vector<2x256xf32> to vector<2xf32>
    %243 = vector.shape_cast %242 : vector<2xf32> to vector<2x1xf32>
    %244 = tpu.concatenate %33, %63, %93, %123, %153, %183, %213, %243 in 1 : vector<2x1xf32>, vector<2x1xf32>, vector<2x1xf32>, vector<2x1xf32>, vector<2x1xf32>, vector<2x1xf32>, vector<2x1xf32>, vector<2x1xf32> -> vector<2x8xf32>
    %c0_83 = arith.constant 0 : index
    %c0_84 = arith.constant 0 : index
    %245 = vector.load %arg8[%c0_83, %c0_84] : memref<2x8xf32, #tpu.memory_space<vmem>>, vector<2x8xf32>
    %246 = arith.addf %245, %244 : vector<2x8xf32>
    %c0_85 = arith.constant 0 : index
    %c0_86 = arith.constant 0 : index
    %247 = vector.load %arg8[%c0_85, %c0_86] : memref<2x8xf32, #tpu.memory_space<vmem>>, vector<2x8xf32>
    tpu.vector_store %arg8[%c0_85, %c0_86], %246 {strides = array<i32>} : memref<2x8xf32, #tpu.memory_space<vmem>>, vector<2x8xf32>,
    %c0_i32_87 = arith.constant 0 : i32
    %248 = arith.cmpi eq, %arg1, %c0_i32_87 : i32
    %249 = arith.extui %248 : i1 to i32
    %c0_i32_88 = arith.constant 0 : i32
    %250 = arith.cmpi ne, %249, %c0_i32_88 : i32
    scf.if %250 {
      %c0_89 = arith.constant 0 : index
      %c0_90 = arith.constant 0 : index
      %251 = vector.load %arg8[%c0_89, %c0_90] : memref<2x8xf32, #tpu.memory_space<vmem>>, vector<2x8xf32>
      %cst_91 = arith.constant 3.906250e-03 : f32
      %252 = vector.broadcast %cst_91 : f32 to vector<2x8xf32>
      %253 = arith.mulf %251, %252 : vector<2x8xf32>
      %c0_92 = arith.constant 0 : index
      %c0_93 = arith.constant 0 : index
      %254 = vector.load %arg5[%c0_92, %c0_93] : memref<8x128xf32, #tpu.memory_space<vmem>>, vector<8x128xf32>
      %cst_94 = arith.constant dense<0.000000e+00> : vector<2x128xf32>
      %255 = tpu.matmul %253, %254, %cst_94 {dimension_numbers = #tpu.dot_dimension_numbers<[1], [0], [0], [1], [0, 0, 1, 1], [], []>} : vector<2x8xf32>, vector<8x128xf32>, vector<2x128xf32> -> vector<2x128xf32>
      %c0_95 = arith.constant 0 : index
      %c0_96 = arith.constant 0 : index
      %256 = vector.load %arg6[%c0_95, %c0_96] : memref<1x128xf32, #tpu.memory_space<vmem>>, vector<1x128xf32>
      %257 = vector.broadcast %256 : vector<1x128xf32> to vector<2x128xf32>
      %258 = arith.addf %255, %257 : vector<2x128xf32>
      %cst_97 = arith.constant dense<0xFF800000> : vector<2xf32>
      %259 = vector.multi_reduction <maximumf>, %258, %cst_97 [1] : vector<2x128xf32> to vector<2xf32>
      %260 = vector.shape_cast %259 : vector<2xf32> to vector<2x1xf32>
      %261 = vector.broadcast %260 : vector<2x1xf32> to vector<2x128xf32>
      %262 = arith.subf %258, %261 : vector<2x128xf32>
      %263 = math.exp %262 : vector<2x128xf32>
      %cst_98 = arith.constant dense<0.000000e+00> : vector<2xf32>
      %264 = vector.multi_reduction <add>, %263, %cst_98 [1] : vector<2x128xf32> to vector<2xf32>
      %265 = vector.shape_cast %264 : vector<2xf32> to vector<2x1xf32>
      %266 = vector.broadcast %265 : vector<2x1xf32> to vector<2x128xf32>
      %267 = arith.divf %263, %266 : vector<2x128xf32>
      %c0_99 = arith.constant 0 : index
      %c0_100 = arith.constant 0 : index
      %268 = vector.load %arg7[%c0_99, %c0_100] : memref<2x128xf32, #tpu.memory_space<vmem>>, vector<2x128xf32>
      tpu.vector_store %arg7[%c0_99, %c0_100], %267 {strides = array<i32>} : memref<2x128xf32, #tpu.memory_space<vmem>>, vector<2x128xf32>,
    } else {
    }
    return
  }
  func.func @transform_0(%arg0: i32, %arg1: i32) -> (i32, i32, i32) {
    %c0_i32 = arith.constant 0 : i32
    %c0_i32_0 = arith.constant 0 : i32
    return %arg0, %c0_i32, %arg1 : i32, i32, i32
  }
  func.func @transform_1(%arg0: i32, %arg1: i32) -> (i32, i32) {
    %c0_i32 = arith.constant 0 : i32
    %c0_i32_0 = arith.constant 0 : i32
    %c0_i32_1 = arith.constant 0 : i32
    return %c0_i32, %c0_i32_0 : i32, i32
  }
  func.func @transform_2(%arg0: i32, %arg1: i32) -> i32 {
    %c0_i32 = arith.constant 0 : i32
    %c0_i32_0 = arith.constant 0 : i32
    return %c0_i32 : i32
  }
  func.func @transform_3(%arg0: i32, %arg1: i32) -> (i32, i32) {
    %c0_i32 = arith.constant 0 : i32
    %c0_i32_0 = arith.constant 0 : i32
    %c0_i32_1 = arith.constant 0 : i32
    return %c0_i32, %c0_i32_0 : i32, i32
  }
  func.func @transform_4(%arg0: i32, %arg1: i32) -> (i32, i32) {
    %c0_i32 = arith.constant 0 : i32
    %c0_i32_0 = arith.constant 0 : i32
    %c0_i32_1 = arith.constant 0 : i32
    return %c0_i32, %c0_i32_0 : i32, i32
  }
  func.func @transform_5(%arg0: i32, %arg1: i32) -> (i32, i32) {
    %c0_i32 = arith.constant 0 : i32
    %c0_i32_0 = arith.constant 0 : i32
    return %arg0, %c0_i32 : i32, i32
  }
}

</mosaic_0001>

<llo_original>
// kernel: tpu_custom_call.1
$region0: #{tpu_custom_call.1}
  #allocation0 [shape = 'u32[]', space=smem, size = 0x4, offset = 0x4, fixed_abs, tag = 'smem constant byte address 0x4 - core index']
  #allocation1 [shape = 'u32[144,128]{1,0:T(1,128)}', space=vmem, size = 0x12000, scoped, tag = 'internal scratch']
  #allocation2 [shape = 'f32[2,8]{1,0:T(2,128)}', space=vmem, size = 0x400, scoped, tag = 'scratch operand']
  %s0 = inlined_call_operand.hbm [shape: f32[2,4,256], index: 0, kind: input, shape index: {}]
  %s1 = inlined_call_operand.vmem [shape: f32[8,4], index: 1, kind: input, shape index: {}]
  %s2 = inlined_call_operand.vmem [shape: f32[8], index: 2, kind: input, shape index: {}]
  %s3 = inlined_call_operand.vmem [shape: f32[8,128], index: 3, kind: input, shape index: {}]
  %s4 = inlined_call_operand.vmem [shape: f32[1,128], index: 4, kind: input, shape index: {}]
  %s5 = inlined_call_operand.hbm [shape: f32[2,128], index: 5, kind: output, shape index: {}]
  %s6 = sld [smem:[#allocation0]]
  $region50: #{tpu_custom_call.1} parent=0
    _
  %s8 = ssub.s32 1, %s6
  %s9 = scalar_select 0, %s8, %s6
  $region1: #{tpu_custom_call.1} parent=0
    #allocation3 [shape = 'u8[8192]{0}', space=vmem, size = 0x2000, scoped, tag = 'input window, operand 0, single buffered']
    #allocation4 [shape = 's32[1]{0}', space=sflag, size = 0x4, scoped, tag = 'scoped memory for tpu_custom_call.1']
    #allocation5 [shape = 's32[1]{0}', space=sflag, size = 0x4, scoped, tag = 'scoped memory for tpu_custom_call.1']
    #allocation6 [shape = 's32[1]{0}', space=sflag, size = 0x4, scoped, tag = 'scoped memory for tpu_custom_call.1']
    #allocation7 [shape = 'u8[4096]{0}', space=smem, size = 0x1000, scoped, tag = 'input window, operand 1, single buffered']
    #allocation8 [shape = 'u8[512]{0}', space=smem, size = 0x200, scoped, tag = 'input window, operand 2, single buffered']
    #allocation9 [shape = 's32[1]{0}', space=sflag, size = 0x4, scoped, tag = 'scoped memory for tpu_custom_call.1']
    #allocation10 [shape = 'u8[1024]{0}', space=vmem, size = 0x400, scoped, tag = 'output window, operand 0, single buffered']
    %10 = vsyncpa [#allocation4], 0
    %11 = vsyncpa [#allocation6], 0
    %12 = vsyncpa [#allocation9], 0
    %13 = vsyncpa [#allocation5], 0
    // Predicated region
    $region2: #{tpu_custom_call.1} parent=1 // pred_check
      _
    $region3: #{tpu_custom_call.1} parent=1 // pred_check_branch
      %15 = sbr.rel (0) target = $region5
    $region4: #{tpu_custom_call.1} parent=1 // pred_region
      %s17 = ssub.s32 256, 256
      %18 = vsyncadd [#allocation4], %s17
      %s19 = sshll.u32 [#allocation3], 4
      %s20 = int_to_ptr.vmem [resolvable:$true] %s19
      %25 = dma.hbm_to_vmem [thread:$0]  %s0, 256, %s20, [#allocation4], 128, 128, 8
    $region5: #{tpu_custom_call.1} parent=1 // pred_fallthru
      _
    // Predicated region
    $region6: #{tpu_custom_call.1} parent=1 // pred_check
      _
    $region7: #{tpu_custom_call.1} parent=1 // pred_check_branch
      %27 = sbr.rel (0) target = $region9
    $region8: #{tpu_custom_call.1} parent=1 // pred_region
      %s29 = ssub.s32 128, 128
      %30 = vsyncadd [#allocation6], %s29
      %s32 = sshll.u32 %s1, 4
      %s33 = int_to_ptr.vmem [resolvable:$true] %s32
      %35 = dma.vmem_to_smem %s33, 128, [#allocation7], [#allocation6]
    $region9: #{tpu_custom_call.1} parent=1 // pred_fallthru
      _
    // Predicated region
    $region10: #{tpu_custom_call.1} parent=1 // pred_check
      _
    $region11: #{tpu_custom_call.1} parent=1 // pred_check_branch
      %37 = sbr.rel (0) target = $region13
    $region12: #{tpu_custom_call.1} parent=1 // pred_region
      %s39 = ssub.s32 16, 16
      %40 = vsyncadd [#allocation9], %s39
      %s42 = sshll.u32 %s2, 4
      %s43 = int_to_ptr.vmem [resolvable:$true] %s42
      %45 = dma.vmem_to_smem %s43, 16, [#allocation8], [#allocation9]
    $region13: #{tpu_custom_call.1} parent=1 // pred_fallthru
      _
    // Predicated region
    $region14: #{tpu_custom_call.1} parent=1 // pred_check
      _
    $region15: #{tpu_custom_call.1} parent=1 // pred_check_branch
      %47 = sbr.rel (0) target = $region17
    $region16: #{tpu_custom_call.1} parent=1 // pred_region
      _
    $region17: #{tpu_custom_call.1} parent=1 // pred_fallthru
      _
    // Predicated region
    $region18: #{tpu_custom_call.1} parent=1 // pred_check
      _
    $region19: #{tpu_custom_call.1} parent=1 // pred_check_branch
      %49 = sbr.rel (0) target = $region21
    $region20: #{tpu_custom_call.1} parent=1 // pred_region
      _
    $region21: #{tpu_custom_call.1} parent=1 // pred_fallthru
      _
    // Predicated region
    $region22: #{tpu_custom_call.1} parent=1 // pred_check
      _
    $region23: #{tpu_custom_call.1} parent=1 // pred_check_branch
      %51 = sbr.rel (0) target = $region25
    $region24: #{tpu_custom_call.1} parent=1 // pred_region
      %52 = dma.done [#allocation4], 256
    $region25: #{tpu_custom_call.1} parent=1 // pred_fallthru
      _
    // Predicated region
    $region26: #{tpu_custom_call.1} parent=1 // pred_check
      _
    $region27: #{tpu_custom_call.1} parent=1 // pred_check_branch
      %54 = sbr.rel (0) target = $region29
    $region28: #{tpu_custom_call.1} parent=1 // pred_region
      %55 = dma.done [#allocation6], 128
    $region29: #{tpu_custom_call.1} parent=1 // pred_fallthru
      _
    // Predicated region
    $region30: #{tpu_custom_call.1} parent=1 // pred_check
      _
    $region31: #{tpu_custom_call.1} parent=1 // pred_check_branch
      %57 = sbr.rel (0) target = $region33
    $region32: #{tpu_custom_call.1} parent=1 // pred_region
      %58 = dma.done [#allocation9], 16
    $region33: #{tpu_custom_call.1} parent=1 // pred_fallthru
      _
    %59 = sfence
    %p60 = scmp.eq.s32.totalorder 0, 0
    // Predicated region
    $region34: #{tpu_custom_call.1} parent=1 // pred_check
      %p61 = pneg %p60
    $region35: #{tpu_custom_call.1} parent=1 // pred_check_branch
      %63 = sbr.rel (%p61) target = $region37
    $region36: #{tpu_custom_call.1} parent=1 // pred_region
      %vm64 = vcmask 58368
      %65 = vst.msk [vmem:[#allocation2] sm:$0x3] %vm64, 0.0
    $region37: #{tpu_custom_call.1} parent=1 // pred_fallthru
      _
    %v66 = vld [vmem:[#allocation3] sm:$0xff]
    %v67 = vld [vmem:[#allocation3 + $0x8] sm:$0xff]
    %s68 = sld [smem:[#allocation7]]
    %v69 = vstv %s68
    %v70 = vmul.f32 %v69, %v66
    %v71 = vmul.f32 %v69, %v67
    %s72 = sld [smem:[#allocation7 + $0x1]]
    %v73 = vstv %s72
    %v74 = vmul.f32 %v73, %v66
    %v75 = vmul.f32 %v73, %v67
    %v78 = vrot.slane %v74, 5
    %v79 = vrot.slane %v78, 4
    %v80 = vrot.slane %v75, 5
    %v81 = vrot.slane %v80, 4
    %v84 = vadd.f32 %v70, %v79
    %v85 = vadd.f32 %v71, %v81
    %s86 = sld [smem:[#allocation7 + $0x2]]
    %v87 = vstv %s86
    %v88 = vmul.f32 %v87, %v66
    %v89 = vmul.f32 %v87, %v67
    %v92 = vrot.slane %v88, 6
    %v93 = vrot.slane %v92, 4
    %v94 = vrot.slane %v89, 6
    %v95 = vrot.slane %v94, 4
    %v98 = vadd.f32 %v84, %v93
    %v99 = vadd.f32 %v85, %v95
    %s100 = sld [smem:[#allocation7 + $0x3]]
    %v101 = vstv %s100
    %v102 = vmul.f32 %v101, %v66
    %v103 = vmul.f32 %v101, %v67
    %v106 = vrot.slane %v102, 7
    %v107 = vrot.slane %v106, 4
    %v108 = vrot.slane %v103, 7
    %v109 = vrot.slane %v108, 4
    %v112 = vadd.f32 %v98, %v107
    %v113 = vadd.f32 %v99, %v109
    %s114 = sld [smem:[#allocation8]]
    %v115 = vstv %s114
    %v116 = vadd.f32 %v112, %v115
    %v117 = vadd.f32 %v113, %v115
    %v118 = vmax.f32 %v116, 0.0
    %v119 = vmax.f32 %v117, 0.0
    %v122 = vlaneseq
    %v123 = vshrl.u32 %v122, 7
    %v124 = vsub.s32 0, %v123
    %v125 = vrot.slane %v118, %v124
    %v126 = vlaneseq
    %v127 = vshrl.u32 %v126, 7
    %v128 = vsub.s32 4, %v127
    %v129 = vrot.slane %v118, %v128
    %v130 = vlaneseq
    %v131 = vshrl.u32 %v130, 7
    %v132 = vsub.s32 0, %v131
    %v133 = vrot.slane %v119, %v132
    %v134 = vlaneseq
    %v135 = vshrl.u32 %v134, 7
    %v136 = vsub.s32 4, %v135
    %v137 = vrot.slane %v119, %v136
    %vm138 = vcmask 1041409
    %v139 = vsel %vm138, %v133, %v125
    %v140 = vsel %vm138, %v137, %v129
    %vm143 = vcmask 1041408
    %v144 = vsel %vm143, %v139, 0.0
    %v145 = vsel %vm143, %v140, 0.0
    %v146 = vadd.f32 %v144, %v145
    %147 = vadd.xlane.f32.xlu0 %v146
    %v148 = vpop.xlane.xlu0 %147
    %s149 = sld [smem:[#allocation7 + $0x80]]
    %v150 = vstv %s149
    %v151 = vmul.f32 %v150, %v66
    %v152 = vmul.f32 %v150, %v67
    %s153 = sld [smem:[#allocation7 + $0x81]]
    %v154 = vstv %s153
    %v155 = vmul.f32 %v154, %v66
    %v156 = vmul.f32 %v154, %v67
    %v159 = vrot.slane %v155, 5
    %v160 = vrot.slane %v159, 4
    %v161 = vrot.slane %v156, 5
    %v162 = vrot.slane %v161, 4
    %v165 = vadd.f32 %v151, %v160
    %v166 = vadd.f32 %v152, %v162
    %s167 = sld [smem:[#allocation7 + $0x82]]
    %v168 = vstv %s167
    %v169 = vmul.f32 %v168, %v66
    %v170 = vmul.f32 %v168, %v67
    %v173 = vrot.slane %v169, 6
    %v174 = vrot.slane %v173, 4
    %v175 = vrot.slane %v170, 6
    %v176 = vrot.slane %v175, 4
    %v179 = vadd.f32 %v165, %v174
    %v180 = vadd.f32 %v166, %v176
    %s181 = sld [smem:[#allocation7 + $0x83]]
    %v182 = vstv %s181
    %v183 = vmul.f32 %v182, %v66
    %v184 = vmul.f32 %v182, %v67
    %v187 = vrot.slane %v183, 7
    %v188 = vrot.slane %v187, 4
    %v189 = vrot.slane %v184, 7
    %v190 = vrot.slane %v189, 4
    %v193 = vadd.f32 %v179, %v188
    %v194 = vadd.f32 %v180, %v190
    %s195 = sld [smem:[#allocation8 + $0x1]]
    %v196 = vstv %s195
    %v197 = vadd.f32 %v193, %v196
    %v198 = vadd.f32 %v194, %v196
    %v199 = vmax.f32 %v197, 0.0
    %v200 = vmax.f32 %v198, 0.0
    %v203 = vlaneseq
    %v204 = vshrl.u32 %v203, 7
    %v205 = vsub.s32 0, %v204
    %v206 = vrot.slane %v199, %v205
    %v207 = vlaneseq
    %v208 = vshrl.u32 %v207, 7
    %v209 = vsub.s32 4, %v208
    %v210 = vrot.slane %v199, %v209
    %v211 = vlaneseq
    %v212 = vshrl.u32 %v211, 7
    %v213 = vsub.s32 0, %v212
    %v214 = vrot.slane %v200, %v213
    %v215 = vlaneseq
    %v216 = vshrl.u32 %v215, 7
    %v217 = vsub.s32 4, %v216
    %v218 = vrot.slane %v200, %v217
    %v219 = vsel %vm138, %v214, %v206
    %v220 = vsel %vm138, %v218, %v210
    %v223 = vsel %vm143, %v219, 0.0
    %v224 = vsel %vm143, %v220, 0.0
    %v225 = vadd.f32 %v223, %v224
    %226 = vadd.xlane.f32.xlu0 %v225
    %v227 = vpop.xlane.xlu0 %226
    %s228 = sld [smem:[#allocation7 + $0x100]]
    %v229 = vstv %s228
    %v230 = vmul.f32 %v229, %v66
    %v231 = vmul.f32 %v229, %v67
    %s232 = sld [smem:[#allocation7 + $0x101]]
    %v233 = vstv %s232
    %v234 = vmul.f32 %v233, %v66
    %v235 = vmul.f32 %v233, %v67
    %v238 = vrot.slane %v234, 5
    %v239 = vrot.slane %v238, 4
    %v240 = vrot.slane %v235, 5
    %v241 = vrot.slane %v240, 4
    %v244 = vadd.f32 %v230, %v239
    %v245 = vadd.f32 %v231, %v241
    %s246 = sld [smem:[#allocation7 + $0x102]]
    %v247 = vstv %s246
    %v248 = vmul.f32 %v247, %v66
    %v249 = vmul.f32 %v247, %v67
    %v252 = vrot.slane %v248, 6
    %v253 = vrot.slane %v252, 4
    %v254 = vrot.slane %v249, 6
    %v255 = vrot.slane %v254, 4
    %v258 = vadd.f32 %v244, %v253
    %v259 = vadd.f32 %v245, %v255
    %s260 = sld [smem:[#allocation7 + $0x103]]
    %v261 = vstv %s260
    %v262 = vmul.f32 %v261, %v66
    %v263 = vmul.f32 %v261, %v67
    %v266 = vrot.slane %v262, 7
    %v267 = vrot.slane %v266, 4
    %v268 = vrot.slane %v263, 7
    %v269 = vrot.slane %v268, 4
    %v272 = vadd.f32 %v258, %v267
    %v273 = vadd.f32 %v259, %v269
    %s274 = sld [smem:[#allocation8 + $0x2]]
    %v275 = vstv %s274
    %v276 = vadd.f32 %v272, %v275
    %v277 = vadd.f32 %v273, %v275
    %v278 = vmax.f32 %v276, 0.0
    %v279 = vmax.f32 %v277, 0.0
    %v282 = vlaneseq
    %v283 = vshrl.u32 %v282, 7
    %v284 = vsub.s32 0, %v283
    %v285 = vrot.slane %v278, %v284
    %v286 = vlaneseq
    %v287 = vshrl.u32 %v286, 7
    %v288 = vsub.s32 4, %v287
    %v289 = vrot.slane %v278, %v288
    %v290 = vlaneseq
    %v291 = vshrl.u32 %v290, 7
    %v292 = vsub.s32 0, %v291
    %v293 = vrot.slane %v279, %v292
    %v294 = vlaneseq
    %v295 = vshrl.u32 %v294, 7
    %v296 = vsub.s32 4, %v295
    %v297 = vrot.slane %v279, %v296
    %v298 = vsel %vm138, %v293, %v285
    %v299 = vsel %vm138, %v297, %v289
    %v302 = vsel %vm143, %v298, 0.0
    %v303 = vsel %vm143, %v299, 0.0
    %v304 = vadd.f32 %v302, %v303
    %305 = vadd.xlane.f32.xlu0 %v304
    %v306 = vpop.xlane.xlu0 %305
    %s307 = sld [smem:[#allocation7 + $0x180]]
    %v308 = vstv %s307
    %v309 = vmul.f32 %v308, %v66
    %v310 = vmul.f32 %v308, %v67
    %s311 = sld [smem:[#allocation7 + $0x181]]
    %v312 = vstv %s311
    %v313 = vmul.f32 %v312, %v66
    %v314 = vmul.f32 %v312, %v67
    %v317 = vrot.slane %v313, 5
    %v318 = vrot.slane %v317, 4
    %v319 = vrot.slane %v314, 5
    %v320 = vrot.slane %v319, 4
    %v323 = vadd.f32 %v309, %v318
    %v324 = vadd.f32 %v310, %v320
    %s325 = sld [smem:[#allocation7 + $0x182]]
    %v326 = vstv %s325
    %v327 = vmul.f32 %v326, %v66
    %v328 = vmul.f32 %v326, %v67
    %v331 = vrot.slane %v327, 6
    %v332 = vrot.slane %v331, 4
    %v333 = vrot.slane %v328, 6
    %v334 = vrot.slane %v333, 4
    %v337 = vadd.f32 %v323, %v332
    %v338 = vadd.f32 %v324, %v334
    %s339 = sld [smem:[#allocation7 + $0x183]]
    %v340 = vstv %s339
    %v341 = vmul.f32 %v340, %v66
    %v342 = vmul.f32 %v340, %v67
    %v345 = vrot.slane %v341, 7
    %v346 = vrot.slane %v345, 4
    %v347 = vrot.slane %v342, 7
    %v348 = vrot.slane %v347, 4
    %v351 = vadd.f32 %v337, %v346
    %v352 = vadd.f32 %v338, %v348
    %s353 = sld [smem:[#allocation8 + $0x3]]
    %v354 = vstv %s353
    %v355 = vadd.f32 %v351, %v354
    %v356 = vadd.f32 %v352, %v354
    %v357 = vmax.f32 %v355, 0.0
    %v358 = vmax.f32 %v356, 0.0
    %v361 = vlaneseq
    %v362 = vshrl.u32 %v361, 7
    %v363 = vsub.s32 0, %v362
    %v364 = vrot.slane %v357, %v363
    %v365 = vlaneseq
    %v366 = vshrl.u32 %v365, 7
    %v367 = vsub.s32 4, %v366
    %v368 = vrot.slane %v357, %v367
    %v369 = vlaneseq
    %v370 = vshrl.u32 %v369, 7
    %v371 = vsub.s32 0, %v370
    %v372 = vrot.slane %v358, %v371
    %v373 = vlaneseq
    %v374 = vshrl.u32 %v373, 7
    %v375 = vsub.s32 4, %v374
    %v376 = vrot.slane %v358, %v375
    %v377 = vsel %vm138, %v372, %v364
    %v378 = vsel %vm138, %v376, %v368
    %v381 = vsel %vm143, %v377, 0.0
    %v382 = vsel %vm143, %v378, 0.0
    %v383 = vadd.f32 %v381, %v382
    %384 = vadd.xlane.f32.xlu0 %v383
    %v385 = vpop.xlane.xlu0 %384
    %s386 = sld [smem:[#allocation7 + $0x200]]
    %v387 = vstv %s386
    %v388 = vmul.f32 %v387, %v66
    %v389 = vmul.f32 %v387, %v67
    %s390 = sld [smem:[#allocation7 + $0x201]]
    %v391 = vstv %s390
    %v392 = vmul.f32 %v391, %v66
    %v393 = vmul.f32 %v391, %v67
    %v396 = vrot.slane %v392, 5
    %v397 = vrot.slane %v396, 4
    %v398 = vrot.slane %v393, 5
    %v399 = vrot.slane %v398, 4
    %v402 = vadd.f32 %v388, %v397
    %v403 = vadd.f32 %v389, %v399
    %s404 = sld [smem:[#allocation7 + $0x202]]
    %v405 = vstv %s404
    %v406 = vmul.f32 %v405, %v66
    %v407 = vmul.f32 %v405, %v67
    %v410 = vrot.slane %v406, 6
    %v411 = vrot.slane %v410, 4
    %v412 = vrot.slane %v407, 6
    %v413 = vrot.slane %v412, 4
    %v416 = vadd.f32 %v402, %v411
    %v417 = vadd.f32 %v403, %v413
    %s418 = sld [smem:[#allocation7 + $0x203]]
    %v419 = vstv %s418
    %v420 = vmul.f32 %v419, %v66
    %v421 = vmul.f32 %v419, %v67
    %v424 = vrot.slane %v420, 7
    %v425 = vrot.slane %v424, 4
    %v426 = vrot.slane %v421, 7
    %v427 = vrot.slane %v426, 4
    %v430 = vadd.f32 %v416, %v425
    %v431 = vadd.f32 %v417, %v427
    %s432 = sld [smem:[#allocation8 + $0x4]]
    %v433 = vstv %s432
    %v434 = vadd.f32 %v430, %v433
    %v435 = vadd.f32 %v431, %v433
    %v436 = vmax.f32 %v434, 0.0
    %v437 = vmax.f32 %v435, 0.0
    %v440 = vlaneseq
    %v441 = vshrl.u32 %v440, 7
    %v442 = vsub.s32 0, %v441
    %v443 = vrot.slane %v436, %v442
    %v444 = vlaneseq
    %v445 = vshrl.u32 %v444, 7
    %v446 = vsub.s32 4, %v445
    %v447 = vrot.slane %v436, %v446
    %v448 = vlaneseq
    %v449 = vshrl.u32 %v448, 7
    %v450 = vsub.s32 0, %v449
    %v451 = vrot.slane %v437, %v450
    %v452 = vlaneseq
    %v453 = vshrl.u32 %v452, 7
    %v454 = vsub.s32 4, %v453
    %v455 = vrot.slane %v437, %v454
    %v456 = vsel %vm138, %v451, %v443
    %v457 = vsel %vm138, %v455, %v447
    %v460 = vsel %vm143, %v456, 0.0
    %v461 = vsel %vm143, %v457, 0.0
    %v462 = vadd.f32 %v460, %v461
    %463 = vadd.xlane.f32.xlu0 %v462
    %v464 = vpop.xlane.xlu0 %463
    %s465 = sld [smem:[#allocation7 + $0x280]]
    %v466 = vstv %s465
    %v467 = vmul.f32 %v466, %v66
    %v468 = vmul.f32 %v466, %v67
    %s469 = sld [smem:[#allocation7 + $0x281]]
    %v470 = vstv %s469
    %v471 = vmul.f32 %v470, %v66
    %v472 = vmul.f32 %v470, %v67
    %v475 = vrot.slane %v471, 5
    %v476 = vrot.slane %v475, 4
    %v477 = vrot.slane %v472, 5
    %v478 = vrot.slane %v477, 4
    %v481 = vadd.f32 %v467, %v476
    %v482 = vadd.f32 %v468, %v478
    %s483 = sld [smem:[#allocation7 + $0x282]]
    %v484 = vstv %s483
    %v485 = vmul.f32 %v484, %v66
    %v486 = vmul.f32 %v484, %v67
    %v489 = vrot.slane %v485, 6
    %v490 = vrot.slane %v489, 4
    %v491 = vrot.slane %v486, 6
    %v492 = vrot.slane %v491, 4
    %v495 = vadd.f32 %v481, %v490
    %v496 = vadd.f32 %v482, %v492
    %s497 = sld [smem:[#allocation7 + $0x283]]
    %v498 = vstv %s497
    %v499 = vmul.f32 %v498, %v66
    %v500 = vmul.f32 %v498, %v67
    %v503 = vrot.slane %v499, 7
    %v504 = vrot.slane %v503, 4
    %v505 = vrot.slane %v500, 7
    %v506 = vrot.slane %v505, 4
    %v509 = vadd.f32 %v495, %v504
    %v510 = vadd.f32 %v496, %v506
    %s511 = sld [smem:[#allocation8 + $0x5]]
    %v512 = vstv %s511
    %v513 = vadd.f32 %v509, %v512
    %v514 = vadd.f32 %v510, %v512
    %v515 = vmax.f32 %v513, 0.0
    %v516 = vmax.f32 %v514, 0.0
    %v519 = vlaneseq
    %v520 = vshrl.u32 %v519, 7
    %v521 = vsub.s32 0, %v520
    %v522 = vrot.slane %v515, %v521
    %v523 = vlaneseq
    %v524 = vshrl.u32 %v523, 7
    %v525 = vsub.s32 4, %v524
    %v526 = vrot.slane %v515, %v525
    %v527 = vlaneseq
    %v528 = vshrl.u32 %v527, 7
    %v529 = vsub.s32 0, %v528
    %v530 = vrot.slane %v516, %v529
    %v531 = vlaneseq
    %v532 = vshrl.u32 %v531, 7
    %v533 = vsub.s32 4, %v532
    %v534 = vrot.slane %v516, %v533
    %v535 = vsel %vm138, %v530, %v522
    %v536 = vsel %vm138, %v534, %v526
    %v539 = vsel %vm143, %v535, 0.0
    %v540 = vsel %vm143, %v536, 0.0
    %v541 = vadd.f32 %v539, %v540
    %542 = vadd.xlane.f32.xlu0 %v541
    %v543 = vpop.xlane.xlu0 %542
    %s544 = sld [smem:[#allocation7 + $0x300]]
    %v545 = vstv %s544
    %v546 = vmul.f32 %v545, %v66
    %v547 = vmul.f32 %v545, %v67
    %s548 = sld [smem:[#allocation7 + $0x301]]
    %v549 = vstv %s548
    %v550 = vmul.f32 %v549, %v66
    %v551 = vmul.f32 %v549, %v67
    %v554 = vrot.slane %v550, 5
    %v555 = vrot.slane %v554, 4
    %v556 = vrot.slane %v551, 5
    %v557 = vrot.slane %v556, 4
    %v560 = vadd.f32 %v546, %v555
    %v561 = vadd.f32 %v547, %v557
    %s562 = sld [smem:[#allocation7 + $0x302]]
    %v563 = vstv %s562
    %v564 = vmul.f32 %v563, %v66
    %v565 = vmul.f32 %v563, %v67
    %v568 = vrot.slane %v564, 6
    %v569 = vrot.slane %v568, 4
    %v570 = vrot.slane %v565, 6
    %v571 = vrot.slane %v570, 4
    %v574 = vadd.f32 %v560, %v569
    %v575 = vadd.f32 %v561, %v571
    %s576 = sld [smem:[#allocation7 + $0x303]]
    %v577 = vstv %s576
    %v578 = vmul.f32 %v577, %v66
    %v579 = vmul.f32 %v577, %v67
    %v582 = vrot.slane %v578, 7
    %v583 = vrot.slane %v582, 4
    %v584 = vrot.slane %v579, 7
    %v585 = vrot.slane %v584, 4
    %v588 = vadd.f32 %v574, %v583
    %v589 = vadd.f32 %v575, %v585
    %s590 = sld [smem:[#allocation8 + $0x6]]
    %v591 = vstv %s590
    %v592 = vadd.f32 %v588, %v591
    %v593 = vadd.f32 %v589, %v591
    %v594 = vmax.f32 %v592, 0.0
    %v595 = vmax.f32 %v593, 0.0
    %v598 = vlaneseq
    %v599 = vshrl.u32 %v598, 7
    %v600 = vsub.s32 0, %v599
    %v601 = vrot.slane %v594, %v600
    %v602 = vlaneseq
    %v603 = vshrl.u32 %v602, 7
    %v604 = vsub.s32 4, %v603
    %v605 = vrot.slane %v594, %v604
    %v606 = vlaneseq
    %v607 = vshrl.u32 %v606, 7
    %v608 = vsub.s32 0, %v607
    %v609 = vrot.slane %v595, %v608
    %v610 = vlaneseq
    %v611 = vshrl.u32 %v610, 7
    %v612 = vsub.s32 4, %v611
    %v613 = vrot.slane %v595, %v612
    %v614 = vsel %vm138, %v609, %v601
    %v615 = vsel %vm138, %v613, %v605
    %v618 = vsel %vm143, %v614, 0.0
    %v619 = vsel %vm143, %v615, 0.0
    %v620 = vadd.f32 %v618, %v619
    %621 = vadd.xlane.f32.xlu0 %v620
    %v622 = vpop.xlane.xlu0 %621
    %s623 = sld [smem:[#allocation7 + $0x380]]
    %v624 = vstv %s623
    %v625 = vmul.f32 %v624, %v66
    %v626 = vmul.f32 %v624, %v67
    %s627 = sld [smem:[#allocation7 + $0x381]]
    %v628 = vstv %s627
    %v629 = vmul.f32 %v628, %v66
    %v630 = vmul.f32 %v628, %v67
    %v633 = vrot.slane %v629, 5
    %v634 = vrot.slane %v633, 4
    %v635 = vrot.slane %v630, 5
    %v636 = vrot.slane %v635, 4
    %v639 = vadd.f32 %v625, %v634
    %v640 = vadd.f32 %v626, %v636
    %s641 = sld [smem:[#allocation7 + $0x382]]
    %v642 = vstv %s641
    %v643 = vmul.f32 %v642, %v66
    %v644 = vmul.f32 %v642, %v67
    %v647 = vrot.slane %v643, 6
    %v648 = vrot.slane %v647, 4
    %v649 = vrot.slane %v644, 6
    %v650 = vrot.slane %v649, 4
    %v653 = vadd.f32 %v639, %v648
    %v654 = vadd.f32 %v640, %v650
    %s655 = sld [smem:[#allocation7 + $0x383]]
    %v656 = vstv %s655
    %v657 = vmul.f32 %v656, %v66
    %v658 = vmul.f32 %v656, %v67
    %v661 = vrot.slane %v657, 7
    %v662 = vrot.slane %v661, 4
    %v663 = vrot.slane %v658, 7
    %v664 = vrot.slane %v663, 4
    %v667 = vadd.f32 %v653, %v662
    %v668 = vadd.f32 %v654, %v664
    %s669 = sld [smem:[#allocation8 + $0x7]]
    %v670 = vstv %s669
    %v671 = vadd.f32 %v667, %v670
    %v672 = vadd.f32 %v668, %v670
    %v673 = vmax.f32 %v671, 0.0
    %v674 = vmax.f32 %v672, 0.0
    %v677 = vlaneseq
    %v678 = vshrl.u32 %v677, 7
    %v679 = vsub.s32 0, %v678
    %v680 = vrot.slane %v673, %v679
    %v681 = vlaneseq
    %v682 = vshrl.u32 %v681, 7
    %v683 = vsub.s32 4, %v682
    %v684 = vrot.slane %v673, %v683
    %v685 = vlaneseq
    %v686 = vshrl.u32 %v685, 7
    %v687 = vsub.s32 0, %v686
    %v688 = vrot.slane %v674, %v687
    %v689 = vlaneseq
    %v690 = vshrl.u32 %v689, 7
    %v691 = vsub.s32 4, %v690
    %v692 = vrot.slane %v674, %v691
    %v693 = vsel %vm138, %v688, %v680
    %v694 = vsel %vm138, %v692, %v684
    %v697 = vsel %vm143, %v693, 0.0
    %v698 = vsel %vm143, %v694, 0.0
    %v699 = vadd.f32 %v697, %v698
    %700 = vadd.xlane.f32.xlu0 %v699
    %v701 = vpop.xlane.xlu0 %700
    %vm702 = vcmask 7168
    %v703 = vsel %vm702, %v148, %v227
    %vm704 = vcmask 15360
    %v705 = vsel %vm704, %v703, %v306
    %vm706 = vcmask 23552
    %v707 = vsel %vm706, %v705, %v385
    %vm708 = vcmask 31744
    %v709 = vsel %vm708, %v707, %v464
    %vm710 = vcmask 39936
    %v711 = vsel %vm710, %v709, %v543
    %vm712 = vcmask 48128
    %v713 = vsel %vm712, %v711, %v622
    %vm714 = vcmask 56320
    %v715 = vsel %vm714, %v713, %v701
    %v716 = vld [vmem:[#allocation2] sm:$0x3]
    %v717 = vadd.f32 %v716, %v715
    %vm718 = vcmask 58368
    %719 = vst.msk [vmem:[#allocation2] sm:$0x3] %vm718, %v717
    // Predicated region
    $region38: #{tpu_custom_call.1} parent=1 // pred_check
      %p720 = pneg %p60
    $region39: #{tpu_custom_call.1} parent=1 // pred_check_branch
      %722 = sbr.rel (%p720) target = $region41
    $region40: #{tpu_custom_call.1} parent=1 // pred_region
      %v723 = vld [vmem:[#allocation2] sm:$0x3]
      %v724 = vmul.f32 %v723, 0.00390625
      %v725 = vld [vmem:[%s3] sm:$0xff]
      %v726 = vld [vmem:[%s4] sm:$0x1]
      %v728 = vlaneseq
      %v729 = vshrl.u32 %v728, 7
      %v730 = vsub.s32 0, %v729
      %v731 = vrot.slane %v726, %v730
      %vm733 = vcmask 64512
      %v735 = vsel %vm733, %v724, 0
      %737 = vmatprep.subr.mxu0 0.0
      %738 = vmatpush1.msra.mxu0 0.0
      %739 = vmatprep.subr.mxu0 0.0
      %740 = vmatpush1.msra.mxu0 0.0
      %741 = vmatprep.subr.mxu0 0.0
      %742 = vmatpush1.msra.mxu0 0.0
      %743 = vmatprep.subr.mxu0 0.0
      %744 = vmatpush1.msra.mxu0 0.0
      %745 = vmatprep.subr.mxu0 0.0
      %746 = vmatpush1.msra.mxu0 0.0
      %747 = vmatprep.subr.mxu0 0.0
      %748 = vmatpush1.msra.mxu0 0.0
      %749 = vmatprep.subr.mxu0 0.0
      %750 = vmatpush1.msra.mxu0 0.0
      %751 = vmatprep.subr.mxu0 0.0
      %752 = vmatpush1.msra.mxu0 0.0
      %753 = vmatprep.subr.mxu0 0.0
      %754 = vmatpush1.msra.mxu0 0.0
      %755 = vmatprep.subr.mxu0 0.0
      %756 = vmatpush1.msra.mxu0 0.0
      %757 = vmatprep.subr.mxu0 0.0
      %758 = vmatpush1.msra.mxu0 0.0
      %759 = vmatprep.subr.mxu0 0.0
      %760 = vmatpush1.msra.mxu0 0.0
      %761 = vmatprep.subr.mxu0 0.0
      %762 = vmatpush1.msra.mxu0 0.0
      %763 = vmatprep.subr.mxu0 0.0
      %764 = vmatpush1.msra.mxu0 0.0
      %765 = vmatprep.subr.mxu0 0.0
      %766 = vmatpush1.msra.mxu0 0.0
      %767 = vmatprep.subr.mxu0 0.0
      %768 = vmatpush1.msra.mxu0 %v725
      %769 = vmatprep.subr.mxu0 0.0
      %770 = vmatpush2.msra.mxu0 0.0
      %771 = vmatprep.subr.mxu0 0.0
      %772 = vmatpush2.msra.mxu0 0.0
      %773 = vmatprep.subr.mxu0 0.0
      %774 = vmatpush2.msra.mxu0 0.0
      %775 = vmatprep.subr.mxu0 0.0
      %776 = vmatpush2.msra.mxu0 0.0
      %777 = vmatprep.subr.mxu0 0.0
      %778 = vmatpush2.msra.mxu0 0.0
      %779 = vmatprep.subr.mxu0 0.0
      %780 = vmatpush2.msra.mxu0 0.0
      %781 = vmatprep.subr.mxu0 0.0
      %782 = vmatpush2.msra.mxu0 0.0
      %783 = vmatprep.subr.mxu0 0.0
      %784 = vmatpush2.msra.mxu0 0.0
      %785 = vmatprep.subr.mxu0 0.0
      %786 = vmatpush2.msra.mxu0 0.0
      %787 = vmatprep.subr.mxu0 0.0
      %788 = vmatpush2.msra.mxu0 0.0
      %789 = vmatprep.subr.mxu0 0.0
      %790 = vmatpush2.msra.mxu0 0.0
      %791 = vmatprep.subr.mxu0 0.0
      %792 = vmatpush2.msra.mxu0 0.0
      %793 = vmatprep.subr.mxu0 0.0
      %794 = vmatpush2.msra.mxu0 0.0
      %795 = vmatprep.subr.mxu0 0.0
      %796 = vmatpush2.msra.mxu0 0.0
      %797 = vmatprep.subr.mxu0 0.0
      %798 = vmatpush2.msra.mxu0 0.0
      %799 = vmatprep.subr.mxu0 0.0
      %800 = vmatpush2.msra.mxu0 0.0
      %801 = vmatprep.mubr.f32.mxu0 0.0
      %802 = vmatmul.mubr.f32.gmra.mxu0 %v735
      %v803 = vpop.f32.mrf.mxu0
      %v804 = vadd.f32 %v731, %v803
      %v805 = vpop.f32.mrf.mxu0
      %806 = vdwg.mxu0
      %v807 = vsel %vm143, %v804, -inf
      %808 = vmax.xlane.f32.xlu0 %v807
      %v809 = vpop.xlane.xlu0 %808
      %v810 = vsub.f32 %v804, %v809
      %v811 = vmul.f32 %v810, 1.442695
      %v812 = vpow.pop %v811
      %v813 = vsel %vm143, %v812, 0.0
      %814 = vadd.xlane.f32.xlu0 %v813
      %v815 = vpop.xlane.xlu0 %814
      %v816 = vrcp.pop %v815
      %v817 = vmul.f32 %v812, %v816
      %818 = vst [vmem:[#allocation10] sm:$0x3] %v817
    $region41: #{tpu_custom_call.1} parent=1 // pred_fallthru
      _
    // Predicated region
    $region42: #{tpu_custom_call.1} parent=1 // pred_check
      _
    $region43: #{tpu_custom_call.1} parent=1 // pred_check_branch
      %820 = sbr.rel (0) target = $region45
    $region44: #{tpu_custom_call.1} parent=1 // pred_region
      %s822 = ssub.s32 32, 32
      %823 = vsyncadd [#allocation5], %s822
      %s825 = sshll.u32 [#allocation10], 4
      %s826 = int_to_ptr.vmem [resolvable:$true] %s825
      %828 = dma.vmem_to_hbm [thread:$0]  %s826, 32, %s5, [#allocation5]
    $region45: #{tpu_custom_call.1} parent=1 // pred_fallthru
      _
    // Predicated region
    $region46: #{tpu_custom_call.1} parent=1 // pred_check
      _
    $region47: #{tpu_custom_call.1} parent=1 // pred_check_branch
      %830 = sbr.rel (0) target = $region49
    $region48: #{tpu_custom_call.1} parent=1 // pred_region
      %831 = dma.done [#allocation5], 32
    $region49: #{tpu_custom_call.1} parent=1 // pred_fallthru
      _
    %832 = vsyncpa [#allocation4], 1
    %833 = vsyncpa [#allocation5], 1
    %834 = vsyncpa [#allocation6], 1
    %835 = vsyncpa [#allocation9], 1

</llo_original>
